<compile_context>
chip_gen: v7x
topology: tpu7x:2x2x1
jax: 0.10.0
libtpu: 0.0.40
codegen_flags: <defaults>
</compile_context>

<pallas_src>
import math
from functools import partial

import jax
import jax.numpy as jnp
from jax.experimental import pallas as pl
from jax.experimental.pallas import tpu as pltpu


# ---------------------------------------------------------------------------
# Kernel 1: fused QKV projection -> head-major (B, H, S, head_dim) outputs.
# ---------------------------------------------------------------------------
def _qkv_proj_kernel(x_ref, wqkv_ref, bqkv_ref, q_ref, k_ref, v_ref, *,
                     d_model, num_heads, head_dim):
    x = x_ref[0].astype(jnp.bfloat16)                       # (Ts, D)
    w = wqkv_ref[...]                                       # (D, 3D) bf16
    y = jnp.dot(x, w, preferred_element_type=jnp.float32)   # (Ts, 3D) f32
    y = y + bqkv_ref[...]                                   # bias (1, 3D)
    # Static per-head slices: only 3*H of them per tile, outside the hot
    # attention loop.  Head-major outputs mean kernel 2 never lane-slices.
    for h in range(num_heads):
        q_ref[0, h] = y[:, 0 * d_model + h * head_dim:
                           0 * d_model + (h + 1) * head_dim].astype(q_ref.dtype)
        k_ref[0, h] = y[:, 1 * d_model + h * head_dim:
                           1 * d_model + (h + 1) * head_dim].astype(k_ref.dtype)
        v_ref[0, h] = y[:, 2 * d_model + h * head_dim:
                           2 * d_model + (h + 1) * head_dim].astype(v_ref.dtype)


# ---------------------------------------------------------------------------
# Kernel 2: flash-style attention + fused output projection.
# grid = (batch, num_q_blocks, num_heads, num_kv_blocks); kv axis innermost.
# ---------------------------------------------------------------------------
def _flash_mha_kernel(q_ref, k_ref, v_ref, wo_ref, bo_ref, o_ref,
                      m_ref, l_ref, acc_ref, out_acc_ref):
    hi = pl.program_id(2)
    ki = pl.program_id(3)
    nh = pl.num_programs(2)
    nk = pl.num_programs(3)

    # Per-(batch, q-tile) output accumulator: seed with the output bias.
    @pl.when((hi == 0) & (ki == 0))
    def _init_out():
        out_acc_ref[...] = jnp.broadcast_to(bo_ref[...], out_acc_ref.shape)

    # Per-(batch, q-tile, head) online-softmax state.
    @pl.when(ki == 0)
    def _init_head():
        m_ref[...] = jnp.full_like(m_ref, -jnp.inf)
        l_ref[...] = jnp.zeros_like(l_ref)
        acc_ref[...] = jnp.zeros_like(acc_ref)

    q = q_ref[0, 0]                      # (Tq, hd) bf16, pre-scaled by 1/sqrt(hd)
    k = k_ref[0, 0]                      # (Tk, hd) bf16
    v = v_ref[0, 0]                      # (Tk, hd) bf16

    # NT contraction straight on the MXU — no transpose of the K tile.
    s = jax.lax.dot_general(q, k, (((1,), (1,)), ((), ())),
                            preferred_element_type=jnp.float32)  # (Tq, Tk) f32

    m_prev = m_ref[...]                                          # (Tq, 1)
    m_new = jnp.maximum(m_prev, jnp.max(s, axis=-1, keepdims=True))
    alpha = jnp.exp(m_prev - m_new)                              # (Tq, 1)
    p = jnp.exp(s - m_new)                                       # (Tq, Tk) f32

    l_ref[...] = alpha * l_ref[...] + jnp.sum(p, axis=-1, keepdims=True)
    acc_ref[...] = alpha * acc_ref[...] + jnp.dot(
        p.astype(jnp.bfloat16), v, preferred_element_type=jnp.float32)
    m_ref[...] = m_new

    # Head epilogue: normalize this head's context and project it with the
    # (hd, D) row-slice of W_o (delivered by the BlockSpec for this head),
    # accumulating into a VMEM scratch ref (not a live register value).
    @pl.when(ki == nk - 1)
    def _finish_head():
        inv_l = pl.reciprocal(l_ref[...], approx=True)           # EUP vrcp
        ctx_h = (acc_ref[...] * inv_l).astype(jnp.bfloat16)      # (Tq, hd)
        out_acc_ref[...] += jnp.dot(ctx_h, wo_ref[...],
                                    preferred_element_type=jnp.float32)

    # Final store once per (batch, q-tile) after the last head.
    @pl.when((hi == nh - 1) & (ki == nk - 1))
    def _finalize():
        o_ref[0] = out_acc_ref[...].astype(o_ref.dtype)


# ---------------------------------------------------------------------------
# Wrapper helpers
# ---------------------------------------------------------------------------
def _pick_block(s, preferred=(512, 256, 128)):
    for t in preferred:
        if s % t == 0:
            return t
    return s  # small / ragged sequence: take the whole thing


def _physical_vmem_bytes():
    try:
        return int(pltpu.get_tpu_info().vmem_capacity_bytes)
    except Exception:
        return 64 * 1024 * 1024  # conservative: v7x per-TensorCore VMEM


def _vmem_limit_bytes(entries):
    """entries: iterable of (shape, dtype, num_buffers).

    Accounts for (8, 128)-tile padding of the last two dims and the number of
    pipeline buffers per block; caps at 75% of the physical per-core VMEM.
    """
    total = 0
    for shape, dtype, nbuf in entries:
        padded = list(shape)
        if len(padded) >= 1:
            padded[-1] = -(-padded[-1] // 128) * 128
        if len(padded) >= 2:
            padded[-2] = -(-padded[-2] // 8) * 8
        total += math.prod(padded) * jnp.dtype(dtype).itemsize * nbuf
    est = int(total * 1.2)                       # layout/temporary headroom
    cap = int(_physical_vmem_bytes() * 3 // 4)   # headroom for Mosaic scratch
    return max(min(est, cap), 16 * 1024 * 1024)


def multi_head_attention(x, wqkv, bqkv, wo, bo, *, num_heads,
                         block_q=None, block_k=None):
    """Forward pass matching the PyTorch MultiHeadAttention module.

    x: (B, S, D); wqkv: (D, 3D); bqkv: (1, 3D); wo: (D, D); bo: (1, D).
    """
    B, S, D = x.shape
    assert D % num_heads == 0
    head_dim = D // num_heads
    assert head_dim % 8 == 0 or head_dim == D, "head_dim must be sublane-aligned"
    scale = head_dim ** -0.5

    # Fold the attention scale into the q columns of the projection (free:
    # avoids scaling the (Tq, Tk) score tiles in the hot loop).
    wqkv_s = wqkv.at[:, :D].multiply(scale).astype(jnp.bfloat16)
    bqkv_s = bqkv.at[:, :D].multiply(scale).astype(jnp.float32)
    wo_bf = wo.astype(jnp.bfloat16)
    bo_f32 = bo.astype(jnp.float32)

    qkv_dtype = jnp.bfloat16

    # ---- Kernel 1: QKV projection (head-major outputs) ---------------------
    ts = _pick_block(S)
    assert S % ts == 0
    proj_vmem = _vmem_limit_bytes([
        ((1, ts, D), x.dtype, 2),
        ((D, 3 * D), jnp.bfloat16, 2),
        ((1, 3 * D), jnp.float32, 2),
        ((1, num_heads, ts, head_dim), qkv_dtype, 6),  # q/k/v, double-buffered
        ((ts, 3 * D), jnp.float32, 2),                 # in-kernel f32 temporaries
    ])
    q, k, v = pl.pallas_call(
        partial(_qkv_proj_kernel, d_model=D, num_heads=num_heads,
                head_dim=head_dim),
        out_shape=(
            jax.ShapeDtypeStruct((B, num_heads, S, head_dim), qkv_dtype),
            jax.ShapeDtypeStruct((B, num_heads, S, head_dim), qkv_dtype),
            jax.ShapeDtypeStruct((B, num_heads, S, head_dim), qkv_dtype),
        ),
        grid_spec=pltpu.PrefetchScalarGridSpec(
            num_scalar_prefetch=0,
            grid=(B, S // ts),
            in_specs=[
                pl.BlockSpec((1, ts, D), lambda b, si: (b, si, 0)),
                pl.BlockSpec((D, 3 * D), lambda b, si: (0, 0)),
                pl.BlockSpec((1, 3 * D), lambda b, si: (0, 0)),
            ],
            out_specs=[
                pl.BlockSpec((1, num_heads, ts, head_dim),
                             lambda b, si: (b, 0, si, 0)),
                pl.BlockSpec((1, num_heads, ts, head_dim),
                             lambda b, si: (b, 0, si, 0)),
                pl.BlockSpec((1, num_heads, ts, head_dim),
                             lambda b, si: (b, 0, si, 0)),
            ],
        ),
        compiler_params=pltpu.CompilerParams(
            dimension_semantics=("parallel", "parallel"),
            vmem_limit_bytes=proj_vmem,
        ),
    )(x, wqkv_s, bqkv_s)

    # ---- Kernel 2: flash attention + fused output projection ---------------
    tq = block_q if block_q is not None else _pick_block(S)
    tk = block_k if block_k is not None else _pick_block(S)
    assert S % tq == 0 and S % tk == 0

    flash_vmem = _vmem_limit_bytes([
        ((1, 1, tq, head_dim), qkv_dtype, 2),          # q
        ((1, 1, tk, head_dim), qkv_dtype, 4),          # k, v
        ((head_dim, D), jnp.bfloat16, 2),              # wo head-slice
        ((1, D), jnp.float32, 2),                      # bo
        ((1, tq, D), x.dtype, 2),                      # output block
        ((tq, 1), jnp.float32, 2),                     # m, l scratch
        ((tq, head_dim), jnp.float32, 1),              # per-head ctx acc
        ((tq, D), jnp.float32, 1),                     # out-proj accumulator
        ((tq, tk), jnp.float32, 3),                    # s / p temporaries
    ])

    out = pl.pallas_call(
        _flash_mha_kernel,
        out_shape=jax.ShapeDtypeStruct((B, S, D), x.dtype),
        grid_spec=pltpu.PrefetchScalarGridSpec(
            num_scalar_prefetch=0,
            grid=(B, S // tq, num_heads, S // tk),
            in_specs=[
                pl.BlockSpec((1, 1, tq, head_dim),
                             lambda b, qi, h, ki: (b, h, qi, 0)),   # q
                pl.BlockSpec((1, 1, tk, head_dim),
                             lambda b, qi, h, ki: (b, h, ki, 0)),   # k
                pl.BlockSpec((1, 1, tk, head_dim),
                             lambda b, qi, h, ki: (b, h, ki, 0)),   # v
                pl.BlockSpec((head_dim, D),
                             lambda b, qi, h, ki: (h, 0)),          # wo rows of head h
                pl.BlockSpec((1, D), lambda b, qi, h, ki: (0, 0)),  # bo
            ],
            out_specs=pl.BlockSpec((1, tq, D),
                                   lambda b, qi, h, ki: (b, qi, 0)),
            scratch_shapes=[
                pltpu.VMEM((tq, 1), jnp.float32),          # running max m
                pltpu.VMEM((tq, 1), jnp.float32),          # running sum l
                pltpu.VMEM((tq, head_dim), jnp.float32),   # per-head context acc
                pltpu.VMEM((tq, D), jnp.float32),          # output-projection acc
            ],
        ),
        compiler_params=pltpu.CompilerParams(
            dimension_semantics=("parallel", "parallel", "arbitrary",
                                 "arbitrary"),
            vmem_limit_bytes=flash_vmem,
        ),
    )(q, k, v, wo_bf, bo_f32)
    return out


# ---------------------------------------------------------------------------
# Pure-JAX reference (matches the PyTorch forward exactly, all f32).
# ---------------------------------------------------------------------------
def mha_reference(x, wqkv, bqkv, wo, bo, *, num_heads):
    B, S, D = x.shape
    head_dim = D // num_heads
    scale = head_dim ** -0.5
    qkv = x @ wqkv + bqkv[0]
    qkv = qkv.reshape(B, S, 3, num_heads, head_dim)
    qkv = jnp.transpose(qkv, (2, 0, 3, 1, 4))
    q, k, v = qkv[0], qkv[1], qkv[2]
    attn = jnp.einsum("bhqd,bhkd->bhqk", q, k) * scale
    attn = jax.nn.softmax(attn, axis=-1)
    ctx = jnp.einsum("bhqk,bhkd->bhqd", attn, v)
    ctx = jnp.transpose(ctx, (0, 2, 1, 3)).reshape(B, S, D)
    return ctx @ wo + bo[0]


def _make_params(key, D):
    k1, k2, k3, k4 = jax.random.split(key, 4)
    wqkv = jax.random.normal(k1, (D, 3 * D), dtype=jnp.float32) * 0.1
    bqkv = jax.random.normal(k2, (1, 3 * D), dtype=jnp.float32) * 0.1
    wo = jax.random.normal(k3, (D, D), dtype=jnp.float32) * 0.1
    bo = jax.random.normal(k4, (1, D), dtype=jnp.float32) * 0.1
    return wqkv, bqkv, wo, bo


if __name__ == "__main__":
    # Config 1: module-like toy shape (single kv block, multiple heads).
    B, S, D, H = 2, 8, 32, 4
    key = jax.random.PRNGKey(0)
    kx, kp, kx2, kp2 = jax.random.split(key, 4)

    x = jax.random.normal(kx, (B, S, D), dtype=jnp.float32)
    wqkv, bqkv, wo, bo = _make_params(kp, D)

    out = multi_head_attention(x, wqkv, bqkv, wo, bo, num_heads=H)
    out = jax.block_until_ready(out)
    ref = mha_reference(x, wqkv, bqkv, wo, bo, num_heads=H)
    assert out.shape == (B, S, D)
    # bf16 MXU operands + approx reciprocal -> loosened tolerance vs f32 ref.
    assert jnp.allclose(out, ref, atol=3e-2, rtol=3e-2), (
        f"mismatch (cfg1): max abs diff {float(jnp.max(jnp.abs(out - ref)))}")

    # Config 2: exercises the multi-kv-block online-softmax path and the
    # cross-head accumulation on the grid.
    B2, S2, D2, H2 = 1, 16, 32, 4
    x2 = jax.random.normal(kx2, (B2, S2, D2), dtype=jnp.float32)
    wqkv2, bqkv2, wo2, bo2 = _make_params(kp2, D2)

    out2 = multi_head_attention(x2, wqkv2, bqkv2, wo2, bo2, num_heads=H2,
                                block_q=8, block_k=8)
    out2 = jax.block_until_ready(out2)
    ref2 = mha_reference(x2, wqkv2, bqkv2, wo2, bo2, num_heads=H2)
    assert out2.shape == (B2, S2, D2)
    assert jnp.allclose(out2, ref2, atol=3e-2, rtol=3e-2), (
        f"mismatch (cfg2): max abs diff {float(jnp.max(jnp.abs(out2 - ref2)))}")

    print("KERNEL_OK")
</pallas_src>

<mosaic_0001>
module attributes {stable_mosaic.version = 11 : i64} {
  func.func @_qkv_proj_kernel(%arg0: i32, %arg1: i32, %arg2: memref<1x8x32xf32, #tpu.memory_space<vmem>>, %arg3: memref<32x96xbf16, #tpu.memory_space<vmem>>, %arg4: memref<1x96xf32, #tpu.memory_space<vmem>>, %arg5: memref<1x4x8x8xbf16, #tpu.memory_space<vmem>>, %arg6: memref<1x4x8x8xbf16, #tpu.memory_space<vmem>>, %arg7: memref<1x4x8x8xbf16, #tpu.memory_space<vmem>>) attributes {dimension_semantics = [#tpu.dimension_semantics<parallel>, #tpu.dimension_semantics<parallel>], iteration_bounds = array<i64: 2, 1>, scalar_prefetch = 0 : i64, scratch_operands = 0 : i64, tpu.core_type = #tpu.core_type<tc>, window_params = [{transform_indices = @transform_0, window_bounds = array<i64: 1, 8, 32>}, {pipeline_mode = #tpu.pipeline_mode<synchronous>, transform_indices = @transform_1, window_bounds = array<i64: 32, 96>}, {pipeline_mode = #tpu.pipeline_mode<synchronous>, transform_indices = @transform_2, window_bounds = array<i64: 1, 96>}, {transform_indices = @transform_3, window_bounds = array<i64: 1, 4, 8, 8>}, {transform_indices = @transform_4, window_bounds = array<i64: 1, 4, 8, 8>}, {transform_indices = @transform_5, window_bounds = array<i64: 1, 4, 8, 8>}]} {
    %c0 = arith.constant 0 : index
    %c0_0 = arith.constant 0 : index
    %c0_1 = arith.constant 0 : index
    %0 = vector.load %arg2[%c0, %c0_0, %c0_1] : memref<1x8x32xf32, #tpu.memory_space<vmem>>, vector<1x8x32xf32>
    %1 = vector.shape_cast %0 : vector<1x8x32xf32> to vector<8x32xf32>
    %2 = arith.truncf %1 : vector<8x32xf32> to vector<8x32xbf16>
    %c0_2 = arith.constant 0 : index
    %c0_3 = arith.constant 0 : index
    %3 = vector.load %arg3[%c0_2, %c0_3] : memref<32x96xbf16, #tpu.memory_space<vmem>>, vector<32x96xbf16>
    %cst = arith.constant dense<0.000000e+00> : vector<8x96xf32>
    %4 = tpu.matmul %2, %3, %cst {dimension_numbers = #tpu.dot_dimension_numbers<[1], [0], [0], [1], [0, 0, 1, 1], [], []>} : vector<8x32xbf16>, vector<32x96xbf16>, vector<8x96xf32> -> vector<8x96xf32>
    %c0_4 = arith.constant 0 : index
    %c0_5 = arith.constant 0 : index
    %5 = vector.load %arg4[%c0_4, %c0_5] : memref<1x96xf32, #tpu.memory_space<vmem>>, vector<1x96xf32>
    %6 = vector.broadcast %5 : vector<1x96xf32> to vector<8x96xf32>
    %7 = arith.addf %4, %6 : vector<8x96xf32>
    %8 = vector.extract_strided_slice %7 {offsets = [0, 0], sizes = [8, 8], strides = [1, 1]} : vector<8x96xf32> to vector<8x8xf32>
    %9 = arith.truncf %8 : vector<8x8xf32> to vector<8x8xbf16>
    %c0_6 = arith.constant 0 : index
    %c0_7 = arith.constant 0 : index
    %c0_8 = arith.constant 0 : index
    %c0_9 = arith.constant 0 : index
    %10 = vector.load %arg5[%c0_6, %c0_7, %c0_8, %c0_9] : memref<1x4x8x8xbf16, #tpu.memory_space<vmem>>, vector<1x1x8x8xbf16>
    %11 = vector.shape_cast %10 : vector<1x1x8x8xbf16> to vector<8x8xbf16>
    %12 = vector.shape_cast %9 : vector<8x8xbf16> to vector<1x1x8x8xbf16>
    tpu.vector_store %arg5[%c0_6, %c0_7, %c0_8, %c0_9], %12 {strides = array<i32>} : memref<1x4x8x8xbf16, #tpu.memory_space<vmem>>, vector<1x1x8x8xbf16>,
    %13 = vector.extract_strided_slice %7 {offsets = [0, 32], sizes = [8, 8], strides = [1, 1]} : vector<8x96xf32> to vector<8x8xf32>
    %14 = arith.truncf %13 : vector<8x8xf32> to vector<8x8xbf16>
    %c0_10 = arith.constant 0 : index
    %c0_11 = arith.constant 0 : index
    %c0_12 = arith.constant 0 : index
    %c0_13 = arith.constant 0 : index
    %15 = vector.load %arg6[%c0_10, %c0_11, %c0_12, %c0_13] : memref<1x4x8x8xbf16, #tpu.memory_space<vmem>>, vector<1x1x8x8xbf16>
    %16 = vector.shape_cast %15 : vector<1x1x8x8xbf16> to vector<8x8xbf16>
    %17 = vector.shape_cast %14 : vector<8x8xbf16> to vector<1x1x8x8xbf16>
    tpu.vector_store %arg6[%c0_10, %c0_11, %c0_12, %c0_13], %17 {strides = array<i32>} : memref<1x4x8x8xbf16, #tpu.memory_space<vmem>>, vector<1x1x8x8xbf16>,
    %18 = vector.extract_strided_slice %7 {offsets = [0, 64], sizes = [8, 8], strides = [1, 1]} : vector<8x96xf32> to vector<8x8xf32>
    %19 = arith.truncf %18 : vector<8x8xf32> to vector<8x8xbf16>
    %c0_14 = arith.constant 0 : index
    %c0_15 = arith.constant 0 : index
    %c0_16 = arith.constant 0 : index
    %c0_17 = arith.constant 0 : index
    %20 = vector.load %arg7[%c0_14, %c0_15, %c0_16, %c0_17] : memref<1x4x8x8xbf16, #tpu.memory_space<vmem>>, vector<1x1x8x8xbf16>
    %21 = vector.shape_cast %20 : vector<1x1x8x8xbf16> to vector<8x8xbf16>
    %22 = vector.shape_cast %19 : vector<8x8xbf16> to vector<1x1x8x8xbf16>
    tpu.vector_store %arg7[%c0_14, %c0_15, %c0_16, %c0_17], %22 {strides = array<i32>} : memref<1x4x8x8xbf16, #tpu.memory_space<vmem>>, vector<1x1x8x8xbf16>,
    %23 = vector.extract_strided_slice %7 {offsets = [0, 8], sizes = [8, 8], strides = [1, 1]} : vector<8x96xf32> to vector<8x8xf32>
    %24 = arith.truncf %23 : vector<8x8xf32> to vector<8x8xbf16>
    %c0_18 = arith.constant 0 : index
    %c1 = arith.constant 1 : index
    %c0_19 = arith.constant 0 : index
    %c0_20 = arith.constant 0 : index
    %25 = vector.load %arg5[%c0_18, %c1, %c0_19, %c0_20] : memref<1x4x8x8xbf16, #tpu.memory_space<vmem>>, vector<1x1x8x8xbf16>
    %26 = vector.shape_cast %25 : vector<1x1x8x8xbf16> to vector<8x8xbf16>
    %27 = vector.shape_cast %24 : vector<8x8xbf16> to vector<1x1x8x8xbf16>
    tpu.vector_store %arg5[%c0_18, %c1, %c0_19, %c0_20], %27 {strides = array<i32>} : memref<1x4x8x8xbf16, #tpu.memory_space<vmem>>, vector<1x1x8x8xbf16>,
    %28 = vector.extract_strided_slice %7 {offsets = [0, 40], sizes = [8, 8], strides = [1, 1]} : vector<8x96xf32> to vector<8x8xf32>
    %29 = arith.truncf %28 : vector<8x8xf32> to vector<8x8xbf16>
    %c0_21 = arith.constant 0 : index
    %c1_22 = arith.constant 1 : index
    %c0_23 = arith.constant 0 : index
    %c0_24 = arith.constant 0 : index
    %30 = vector.load %arg6[%c0_21, %c1_22, %c0_23, %c0_24] : memref<1x4x8x8xbf16, #tpu.memory_space<vmem>>, vector<1x1x8x8xbf16>
    %31 = vector.shape_cast %30 : vector<1x1x8x8xbf16> to vector<8x8xbf16>
    %32 = vector.shape_cast %29 : vector<8x8xbf16> to vector<1x1x8x8xbf16>
    tpu.vector_store %arg6[%c0_21, %c1_22, %c0_23, %c0_24], %32 {strides = array<i32>} : memref<1x4x8x8xbf16, #tpu.memory_space<vmem>>, vector<1x1x8x8xbf16>,
    %33 = vector.extract_strided_slice %7 {offsets = [0, 72], sizes = [8, 8], strides = [1, 1]} : vector<8x96xf32> to vector<8x8xf32>
    %34 = arith.truncf %33 : vector<8x8xf32> to vector<8x8xbf16>
    %c0_25 = arith.constant 0 : index
    %c1_26 = arith.constant 1 : index
    %c0_27 = arith.constant 0 : index
    %c0_28 = arith.constant 0 : index
    %35 = vector.load %arg7[%c0_25, %c1_26, %c0_27, %c0_28] : memref<1x4x8x8xbf16, #tpu.memory_space<vmem>>, vector<1x1x8x8xbf16>
    %36 = vector.shape_cast %35 : vector<1x1x8x8xbf16> to vector<8x8xbf16>
    %37 = vector.shape_cast %34 : vector<8x8xbf16> to vector<1x1x8x8xbf16>
    tpu.vector_store %arg7[%c0_25, %c1_26, %c0_27, %c0_28], %37 {strides = array<i32>} : memref<1x4x8x8xbf16, #tpu.memory_space<vmem>>, vector<1x1x8x8xbf16>,
    %38 = vector.extract_strided_slice %7 {offsets = [0, 16], sizes = [8, 8], strides = [1, 1]} : vector<8x96xf32> to vector<8x8xf32>
    %39 = arith.truncf %38 : vector<8x8xf32> to vector<8x8xbf16>
    %c0_29 = arith.constant 0 : index
    %c2 = arith.constant 2 : index
    %c0_30 = arith.constant 0 : index
    %c0_31 = arith.constant 0 : index
    %40 = vector.load %arg5[%c0_29, %c2, %c0_30, %c0_31] : memref<1x4x8x8xbf16, #tpu.memory_space<vmem>>, vector<1x1x8x8xbf16>
    %41 = vector.shape_cast %40 : vector<1x1x8x8xbf16> to vector<8x8xbf16>
    %42 = vector.shape_cast %39 : vector<8x8xbf16> to vector<1x1x8x8xbf16>
    tpu.vector_store %arg5[%c0_29, %c2, %c0_30, %c0_31], %42 {strides = array<i32>} : memref<1x4x8x8xbf16, #tpu.memory_space<vmem>>, vector<1x1x8x8xbf16>,
    %43 = vector.extract_strided_slice %7 {offsets = [0, 48], sizes = [8, 8], strides = [1, 1]} : vector<8x96xf32> to vector<8x8xf32>
    %44 = arith.truncf %43 : vector<8x8xf32> to vector<8x8xbf16>
    %c0_32 = arith.constant 0 : index
    %c2_33 = arith.constant 2 : index
    %c0_34 = arith.constant 0 : index
    %c0_35 = arith.constant 0 : index
    %45 = vector.load %arg6[%c0_32, %c2_33, %c0_34, %c0_35] : memref<1x4x8x8xbf16, #tpu.memory_space<vmem>>, vector<1x1x8x8xbf16>
    %46 = vector.shape_cast %45 : vector<1x1x8x8xbf16> to vector<8x8xbf16>
    %47 = vector.shape_cast %44 : vector<8x8xbf16> to vector<1x1x8x8xbf16>
    tpu.vector_store %arg6[%c0_32, %c2_33, %c0_34, %c0_35], %47 {strides = array<i32>} : memref<1x4x8x8xbf16, #tpu.memory_space<vmem>>, vector<1x1x8x8xbf16>,
    %48 = vector.extract_strided_slice %7 {offsets = [0, 80], sizes = [8, 8], strides = [1, 1]} : vector<8x96xf32> to vector<8x8xf32>
    %49 = arith.truncf %48 : vector<8x8xf32> to vector<8x8xbf16>
    %c0_36 = arith.constant 0 : index
    %c2_37 = arith.constant 2 : index
    %c0_38 = arith.constant 0 : index
    %c0_39 = arith.constant 0 : index
    %50 = vector.load %arg7[%c0_36, %c2_37, %c0_38, %c0_39] : memref<1x4x8x8xbf16, #tpu.memory_space<vmem>>, vector<1x1x8x8xbf16>
    %51 = vector.shape_cast %50 : vector<1x1x8x8xbf16> to vector<8x8xbf16>
    %52 = vector.shape_cast %49 : vector<8x8xbf16> to vector<1x1x8x8xbf16>
    tpu.vector_store %arg7[%c0_36, %c2_37, %c0_38, %c0_39], %52 {strides = array<i32>} : memref<1x4x8x8xbf16, #tpu.memory_space<vmem>>, vector<1x1x8x8xbf16>,
    %53 = vector.extract_strided_slice %7 {offsets = [0, 24], sizes = [8, 8], strides = [1, 1]} : vector<8x96xf32> to vector<8x8xf32>
    %54 = arith.truncf %53 : vector<8x8xf32> to vector<8x8xbf16>
    %c0_40 = arith.constant 0 : index
    %c3 = arith.constant 3 : index
    %c0_41 = arith.constant 0 : index
    %c0_42 = arith.constant 0 : index
    %55 = vector.load %arg5[%c0_40, %c3, %c0_41, %c0_42] : memref<1x4x8x8xbf16, #tpu.memory_space<vmem>>, vector<1x1x8x8xbf16>
    %56 = vector.shape_cast %55 : vector<1x1x8x8xbf16> to vector<8x8xbf16>
    %57 = vector.shape_cast %54 : vector<8x8xbf16> to vector<1x1x8x8xbf16>
    tpu.vector_store %arg5[%c0_40, %c3, %c0_41, %c0_42], %57 {strides = array<i32>} : memref<1x4x8x8xbf16, #tpu.memory_space<vmem>>, vector<1x1x8x8xbf16>,
    %58 = vector.extract_strided_slice %7 {offsets = [0, 56], sizes = [8, 8], strides = [1, 1]} : vector<8x96xf32> to vector<8x8xf32>
    %59 = arith.truncf %58 : vector<8x8xf32> to vector<8x8xbf16>
    %c0_43 = arith.constant 0 : index
    %c3_44 = arith.constant 3 : index
    %c0_45 = arith.constant 0 : index
    %c0_46 = arith.constant 0 : index
    %60 = vector.load %arg6[%c0_43, %c3_44, %c0_45, %c0_46] : memref<1x4x8x8xbf16, #tpu.memory_space<vmem>>, vector<1x1x8x8xbf16>
    %61 = vector.shape_cast %60 : vector<1x1x8x8xbf16> to vector<8x8xbf16>
    %62 = vector.shape_cast %59 : vector<8x8xbf16> to vector<1x1x8x8xbf16>
    tpu.vector_store %arg6[%c0_43, %c3_44, %c0_45, %c0_46], %62 {strides = array<i32>} : memref<1x4x8x8xbf16, #tpu.memory_space<vmem>>, vector<1x1x8x8xbf16>,
    %63 = vector.extract_strided_slice %7 {offsets = [0, 88], sizes = [8, 8], strides = [1, 1]} : vector<8x96xf32> to vector<8x8xf32>
    %64 = arith.truncf %63 : vector<8x8xf32> to vector<8x8xbf16>
    %c0_47 = arith.constant 0 : index
    %c3_48 = arith.constant 3 : index
    %c0_49 = arith.constant 0 : index
    %c0_50 = arith.constant 0 : index
    %65 = vector.load %arg7[%c0_47, %c3_48, %c0_49, %c0_50] : memref<1x4x8x8xbf16, #tpu.memory_space<vmem>>, vector<1x1x8x8xbf16>
    %66 = vector.shape_cast %65 : vector<1x1x8x8xbf16> to vector<8x8xbf16>
    %67 = vector.shape_cast %64 : vector<8x8xbf16> to vector<1x1x8x8xbf16>
    tpu.vector_store %arg7[%c0_47, %c3_48, %c0_49, %c0_50], %67 {strides = array<i32>} : memref<1x4x8x8xbf16, #tpu.memory_space<vmem>>, vector<1x1x8x8xbf16>,
    return
  }
  func.func @transform_0(%arg0: i32, %arg1: i32) -> (i32, i32, i32) {
    %c0_i32 = arith.constant 0 : i32
    %c0_i32_0 = arith.constant 0 : i32
    return %arg0, %arg1, %c0_i32 : i32, i32, i32
  }
  func.func @transform_1(%arg0: i32, %arg1: i32) -> (i32, i32) {
    %c0_i32 = arith.constant 0 : i32
    %c0_i32_0 = arith.constant 0 : i32
    %c0_i32_1 = arith.constant 0 : i32
    return %c0_i32, %c0_i32_0 : i32, i32
  }
  func.func @transform_2(%arg0: i32, %arg1: i32) -> (i32, i32) {
    %c0_i32 = arith.constant 0 : i32
    %c0_i32_0 = arith.constant 0 : i32
    %c0_i32_1 = arith.constant 0 : i32
    return %c0_i32, %c0_i32_0 : i32, i32
  }
  func.func @transform_3(%arg0: i32, %arg1: i32) -> (i32, i32, i32, i32) {
    %c0_i32 = arith.constant 0 : i32
    %c0_i32_0 = arith.constant 0 : i32
    %c0_i32_1 = arith.constant 0 : i32
    return %arg0, %c0_i32, %arg1, %c0_i32_0 : i32, i32, i32, i32
  }
  func.func @transform_4(%arg0: i32, %arg1: i32) -> (i32, i32, i32, i32) {
    %c0_i32 = arith.constant 0 : i32
    %c0_i32_0 = arith.constant 0 : i32
    %c0_i32_1 = arith.constant 0 : i32
    return %arg0, %c0_i32, %arg1, %c0_i32_0 : i32, i32, i32, i32
  }
  func.func @transform_5(%arg0: i32, %arg1: i32) -> (i32, i32, i32, i32) {
    %c0_i32 = arith.constant 0 : i32
    %c0_i32_0 = arith.constant 0 : i32
    %c0_i32_1 = arith.constant 0 : i32
    return %arg0, %c0_i32, %arg1, %c0_i32_0 : i32, i32, i32, i32
  }
}

</mosaic_0001>

<llo_original>
// kernel: tpu_custom_call.1
$region0: #{tpu_custom_call.1}
  #allocation0 [shape = 'u32[]', space=smem, size = 0x4, offset = 0x4, fixed_abs, tag = 'smem constant byte address 0x4 - core index']
  #allocation1 [shape = 'u32[144,128]{1,0:T(1,128)}', space=vmem, size = 0x12000, scoped, tag = 'internal scratch']
  %s0 = inlined_call_operand.hbm [shape: f32[2,8,32], index: 0, kind: input, shape index: {}]
  %s1 = inlined_call_operand.hbm [shape: bf16[32,96], index: 1, kind: input, shape index: {}]
  %s2 = inlined_call_operand.vmem [shape: f32[1,96], index: 2, kind: input, shape index: {}]
  %s3 = inlined_call_operand.hbm [shape: bf16[2,4,8,8], index: 3, kind: output, shape index: {0}]
  %s4 = inlined_call_operand.hbm [shape: bf16[2,4,8,8], index: 4, kind: output, shape index: {1}]
  %s5 = inlined_call_operand.hbm [shape: bf16[2,4,8,8], index: 5, kind: output, shape index: {2}]
  %6 = xla_tuple %s3, %s4, %s5
  %s7 = sld [smem:[#allocation0]]
  $region69: #{tpu_custom_call.1} parent=0
    _
  %s9 = ssub.s32 1, %s7
  %s10 = scalar_select 0, %s9, %s7
  $region1: #{tpu_custom_call.1} parent=0
    #allocation2 [shape = 'u8[8192]{0}', space=vmem, size = 0x2000, scoped, tag = 'input window, operand 0']
    #allocation3 [shape = 's32[2]{0}', space=sflag, size = 0x8, scoped, tag = 'scoped memory for tpu_custom_call.1']
    #allocation4 [shape = 's32[2]{0}', space=sflag, size = 0x8, scoped, tag = 'scoped memory for tpu_custom_call.1']
    #allocation5 [shape = 'u8[8192]{0}', space=vmem, size = 0x2000, scoped, tag = 'input window, operand 1, single buffered']
    #allocation6 [shape = 's32[1]{0}', space=sflag, size = 0x4, scoped, tag = 'scoped memory for tpu_custom_call.1']
    #allocation7 [shape = 'u8[16384]{0}', space=vmem, size = 0x4000, scoped, tag = 'output window, operand 0']
    #allocation8 [shape = 'u8[16384]{0}', space=vmem, size = 0x4000, scoped, tag = 'output window, operand 1']
    #allocation9 [shape = 's32[2]{0}', space=sflag, size = 0x8, scoped, tag = 'scoped memory for tpu_custom_call.1']
    #allocation10 [shape = 'u8[16384]{0}', space=vmem, size = 0x4000, scoped, tag = 'output window, operand 2']
    %11 = vsyncpa [#allocation3], 0
    %s12 = scalar_lea.sflag [#allocation3], 1
    %13 = vsyncpa %s12, 0
    %14 = vsyncpa [#allocation6], 0
    %15 = vsyncpa [#allocation4], 0
    %s16 = scalar_lea.sflag [#allocation4], 1
    %17 = vsyncpa %s16, 0
    %18 = vsyncpa [#allocation9], 0
    %s19 = scalar_lea.sflag [#allocation9], 1
    %20 = vsyncpa %s19, 0
    loop: start=0, step=1, limit=4
    $region2: #{tpu_custom_call.1} parent=1 // loop_pre_header
      _
    $region3: #{tpu_custom_call.1} parent=1 // loop_header
      %s22 = sphi 0, %s26
      %p23 = scmp.ge.s32.totalorder %s22, 4
      %s29 = sphi 0, %s41
      %s30 = sphi 0, %s37
      %s31 = sphi 0, %s29
      %s32 = sphi 0, %s30
      %s33 = sphi 0, %s31
      %s34 = sphi 0, %s32
      %s46 = sphi 0, %s48
      %s49 = sphi 0, %s46
      %s50 = sphi 0, %s49
      %s66 = sphi 0, %s50
      %s70 = sphi 0, %s70
      %s72 = sphi 0, %s70
      %s73 = sphi 0, %s72
      %s87 = sphi 0, %s73
      %s91 = sphi 0, %s91
      %s93 = sphi 0, %s91
      %s94 = sphi 0, %s93
      %s108 = sphi 0, %s94
      %s116 = sphi 0, %s118
      %s119 = sphi 0, %s116
      %s120 = sphi 0, %s119
      %s136 = sphi 0, %s120
      %s144 = sphi 0, %s146
      %s147 = sphi 0, %s144
      %s148 = sphi 0, %s147
      %s164 = sphi 0, %s148
      %s172 = sphi 0, %s174
      %s175 = sphi 0, %s172
      %s176 = sphi 0, %s175
      %s192 = sphi 0, %s176
    $region4: #{tpu_custom_call.1} parent=1 // loop_header_branch
      %25 = sbr.rel (%p23) target = $region8
    $region5: #{tpu_custom_call.1} parent=1 // loop_body
      %s27 = ssub.s32 %s22, 1
      %s28 = ssub.s32 %s22, 2
      %s35 = sadd.s32 1, %s30
      %p36 = scmp.ge.s32.totalorder %s35, 1
      %s37 = scalar_select %p36, 0, %s35
      %s38 = sadd.s32 1, %s29
      %s39 = scalar_select %p36, %s38, %s29
      %p40 = scmp.ge.s32.totalorder %s39, 2
      %s41 = scalar_select %p40, 0, %s39
      %s42 = ssub.s32 %s29, %s41
      %s43 = ssub.s32 %s30, %s37
      %s44 = sor.u32 %s42, %s43
      %p45 = scmp.eq.s32.totalorder %s44, 0
      %s47 = sadd.s32 %s46, 1
      %s48 = scalar_select %p45, %s46, %s47
      %p51 = pneg %p45
      %p52 = scmp.eq.s32.totalorder %s22, 1
      %p53 = por %p51, %p52
      %p54 = scmp.ne.s32.totalorder %s46, %s49
      %p55 = scmp.eq.s32.totalorder %s22, 0
      %p56 = por %p54, %p55
      %p57 = scmp.ne.s32.totalorder %s46, %s49
      %p58 = scmp.eq.s32.totalorder %s27, 1
      %p59 = por %p57, %p58
      %p60 = scmp.ne.s32.totalorder %s49, %s50
      %p61 = scmp.eq.s32.totalorder %s27, 0
      %p62 = por %p60, %p61
      %p63 = scmp.ne.s32.totalorder %s49, %s50
      %p64 = scmp.eq.s32.totalorder %s28, 1
      %p65 = por %p63, %p64
      %p67 = scmp.ne.s32.totalorder %s50, %s66
      %p68 = scmp.eq.s32.totalorder %s28, 0
      %p69 = por %p67, %p68
      %s71 = sadd.s32 %s70, 1
      %p74 = scmp.eq.s32.totalorder %s22, 1
      %p75 = scmp.ne.s32.totalorder %s70, %s72
      %p76 = scmp.eq.s32.totalorder %s22, 0
      %p77 = por %p75, %p76
      %p78 = scmp.ne.s32.totalorder %s70, %s72
      %p79 = scmp.eq.s32.totalorder %s27, 1
      %p80 = por %p78, %p79
      %p81 = scmp.ne.s32.totalorder %s72, %s73
      %p82 = scmp.eq.s32.totalorder %s27, 0
      %p83 = por %p81, %p82
      %p84 = scmp.ne.s32.totalorder %s72, %s73
      %p85 = scmp.eq.s32.totalorder %s28, 1
      %p86 = por %p84, %p85
      %p88 = scmp.ne.s32.totalorder %s73, %s87
      %p89 = scmp.eq.s32.totalorder %s28, 0
      %p90 = por %p88, %p89
      %s92 = sadd.s32 %s91, 1
      %p95 = scmp.eq.s32.totalorder %s22, 1
      %p96 = scmp.ne.s32.totalorder %s91, %s93
      %p97 = scmp.eq.s32.totalorder %s22, 0
      %p98 = por %p96, %p97
      %p99 = scmp.ne.s32.totalorder %s91, %s93
      %p100 = scmp.eq.s32.totalorder %s27, 1
      %p101 = por %p99, %p100
      %p102 = scmp.ne.s32.totalorder %s93, %s94
      %p103 = scmp.eq.s32.totalorder %s27, 0
      %p104 = por %p102, %p103
      %p105 = scmp.ne.s32.totalorder %s93, %s94
      %p106 = scmp.eq.s32.totalorder %s28, 1
      %p107 = por %p105, %p106
      %p109 = scmp.ne.s32.totalorder %s94, %s108
      %p110 = scmp.eq.s32.totalorder %s28, 0
      %p111 = por %p109, %p110
      %s112 = ssub.s32 %s29, %s41
      %s113 = ssub.s32 %s30, %s37
      %s114 = sor.u32 %s112, %s113
      %p115 = scmp.eq.s32.totalorder %s114, 0
      %s117 = sadd.s32 %s116, 1
      %s118 = scalar_select %p115, %s116, %s117
      %p121 = pneg %p115
      %p122 = scmp.eq.s32.totalorder %s22, 1
      %p123 = por %p121, %p122
      %p124 = scmp.ne.s32.totalorder %s116, %s119
      %p125 = scmp.eq.s32.totalorder %s22, 0
      %p126 = por %p124, %p125
      %p127 = scmp.ne.s32.totalorder %s116, %s119
      %p128 = scmp.eq.s32.totalorder %s27, 1
      %p129 = por %p127, %p128
      %p130 = scmp.ne.s32.totalorder %s119, %s120
      %p131 = scmp.eq.s32.totalorder %s27, 0
      %p132 = por %p130, %p131
      %p133 = scmp.ne.s32.totalorder %s119, %s120
      %p134 = scmp.eq.s32.totalorder %s28, 1
      %p135 = por %p133, %p134
      %p137 = scmp.ne.s32.totalorder %s120, %s136
      %p138 = scmp.eq.s32.totalorder %s28, 0
      %p139 = por %p137, %p138
      %s140 = ssub.s32 %s29, %s41
      %s141 = ssub.s32 %s30, %s37
      %s142 = sor.u32 %s140, %s141
      %p143 = scmp.eq.s32.totalorder %s142, 0
      %s145 = sadd.s32 %s144, 1
      %s146 = scalar_select %p143, %s144, %s145
      %p149 = pneg %p143
      %p150 = scmp.eq.s32.totalorder %s22, 1
      %p151 = por %p149, %p150
      %p152 = scmp.ne.s32.totalorder %s144, %s147
      %p153 = scmp.eq.s32.totalorder %s22, 0
      %p154 = por %p152, %p153
      %p155 = scmp.ne.s32.totalorder %s144, %s147
      %p156 = scmp.eq.s32.totalorder %s27, 1
      %p157 = por %p155, %p156
      %p158 = scmp.ne.s32.totalorder %s147, %s148
      %p159 = scmp.eq.s32.totalorder %s27, 0
      %p160 = por %p158, %p159
      %p161 = scmp.ne.s32.totalorder %s147, %s148
      %p162 = scmp.eq.s32.totalorder %s28, 1
      %p163 = por %p161, %p162
      %p165 = scmp.ne.s32.totalorder %s148, %s164
      %p166 = scmp.eq.s32.totalorder %s28, 0
      %p167 = por %p165, %p166
      %s168 = ssub.s32 %s29, %s41
      %s169 = ssub.s32 %s30, %s37
      %s170 = sor.u32 %s168, %s169
      %p171 = scmp.eq.s32.totalorder %s170, 0
      %s173 = sadd.s32 %s172, 1
      %s174 = scalar_select %p171, %s172, %s173
      %p177 = pneg %p171
      %p178 = scmp.eq.s32.totalorder %s22, 1
      %p179 = por %p177, %p178
      %p180 = scmp.ne.s32.totalorder %s172, %s175
      %p181 = scmp.eq.s32.totalorder %s22, 0
      %p182 = por %p180, %p181
      %p183 = scmp.ne.s32.totalorder %s172, %s175
      %p184 = scmp.eq.s32.totalorder %s27, 1
      %p185 = por %p183, %p184
      %p186 = scmp.ne.s32.totalorder %s175, %s176
      %p187 = scmp.eq.s32.totalorder %s27, 0
      %p188 = por %p186, %p187
      %p189 = scmp.ne.s32.totalorder %s175, %s176
      %p190 = scmp.eq.s32.totalorder %s28, 1
      %p191 = por %p189, %p190
      %p193 = scmp.ne.s32.totalorder %s176, %s192
      %p194 = scmp.eq.s32.totalorder %s28, 0
      %p195 = por %p193, %p194
      %p196 = scmp.le.s32.totalorder 1, %s22
      %p197 = scmp.lt.s32.totalorder %s22, 3
      %p198 = pnand %p196, %p197
      %p199 = pneg %p198
      // Predicated region
      $region9: #{tpu_custom_call.1} parent=5 // pred_check
        _
      $region10: #{tpu_custom_call.1} parent=5 // pred_check_branch
        %201 = sbr.rel (%p198) target = $region12
      $region11: #{tpu_custom_call.1} parent=5 // pred_region
        %s202 = ssub.s32 %s22, 1
        // Predicated region
        $region13: #{tpu_custom_call.1} parent=11 // pred_check
          %p203 = pneg %p83
        $region14: #{tpu_custom_call.1} parent=11 // pred_check_branch
          %205 = sbr.rel (%p203) target = $region16
        $region15: #{tpu_custom_call.1} parent=11 // pred_region
          %s207 = ssub.s32 256, 256
          %208 = vsyncadd [#allocation6], %s207
          %s209 = sshll.u32 [#allocation5], 4
          %s210 = int_to_ptr.vmem [resolvable:$true] %s209
          %215 = dma.hbm_to_vmem [thread:$0]  %s1, 256, %s210, [#allocation6], 64, 64, 4
        $region16: #{tpu_custom_call.1} parent=11 // pred_fallthru
          _
        // Predicated region
        $region17: #{tpu_custom_call.1} parent=11 // pred_check
          %p216 = pneg %p104
        $region18: #{tpu_custom_call.1} parent=11 // pred_check_branch
          %218 = sbr.rel (%p216) target = $region20
        $region19: #{tpu_custom_call.1} parent=11 // pred_region
          _
        $region20: #{tpu_custom_call.1} parent=11 // pred_fallthru
          _
      $region12: #{tpu_custom_call.1} parent=5 // pred_fallthru
        _
      %p219 = scmp.lt.s32.totalorder %s22, 2
      // Predicated region
      $region21: #{tpu_custom_call.1} parent=5 // pred_check
        %p220 = pneg %p219
      $region22: #{tpu_custom_call.1} parent=5 // pred_check_branch
        %222 = sbr.rel (%p220) target = $region24
      $region23: #{tpu_custom_call.1} parent=5 // pred_region
        // Predicated region
        $region25: #{tpu_custom_call.1} parent=23 // pred_check
          %p223 = pneg %p56
        $region26: #{tpu_custom_call.1} parent=23 // pred_check_branch
          %225 = sbr.rel (%p223) target = $region28
        $region27: #{tpu_custom_call.1} parent=23 // pred_region
          %s226 = sand.u32 %s46, 1
          %s227 = scalar_lea.sflag [#allocation3], %s226
          %s228 = sand.u32 %s46, 1
          %s229 = smul.addr %s228, 8
          %s230 = scalar_lea.vmem [#allocation2], %s229
          %s232 = ssub.s32 128, 128
          %233 = vsyncadd %s227, %s232
          %s234 = sadd.s32 %s30, %s29
          %s235 = smul.addr %s234, 128
          %s236 = scalar_lea.hbm %s0, %s235
          %s238 = sshll.u32 %s230, 4
          %s239 = int_to_ptr.vmem [resolvable:$true] %s238
          %241 = dma.hbm_to_vmem [thread:$0]  %s236, 128, %s239, %s227
        $region28: #{tpu_custom_call.1} parent=23 // pred_fallthru
          _
      $region24: #{tpu_custom_call.1} parent=5 // pred_fallthru
        _
      %p242 = scmp.le.s32.totalorder 1, %s22
      %p243 = scmp.lt.s32.totalorder %s22, 3
      %p244 = pnand %p242, %p243
      %p245 = pneg %p244
      // Predicated region
      $region29: #{tpu_custom_call.1} parent=5 // pred_check
        _
      $region30: #{tpu_custom_call.1} parent=5 // pred_check_branch
        %247 = sbr.rel (%p244) target = $region32
      $region31: #{tpu_custom_call.1} parent=5 // pred_region
        %s248 = ssub.s32 %s22, 1
        %s249 = sand.u32 %s49, 1
        %s250 = scalar_lea.sflag [#allocation3], %s249
        %s251 = sand.u32 %s49, 1
        %s252 = smul.addr %s251, 8
        %s253 = scalar_lea.vmem [#allocation2], %s252
        // Predicated region
        $region33: #{tpu_custom_call.1} parent=31 // pred_check
          %p254 = pneg %p62
        $region34: #{tpu_custom_call.1} parent=31 // pred_check_branch
          %256 = sbr.rel (%p254) target = $region36
        $region35: #{tpu_custom_call.1} parent=31 // pred_region
          %257 = dma.done %s250, 128
        $region36: #{tpu_custom_call.1} parent=31 // pred_fallthru
          _
        // Predicated region
        $region37: #{tpu_custom_call.1} parent=31 // pred_check
          %p258 = pneg %p83
        $region38: #{tpu_custom_call.1} parent=31 // pred_check_branch
          %260 = sbr.rel (%p258) target = $region40
        $region39: #{tpu_custom_call.1} parent=31 // pred_region
          %261 = dma.done [#allocation6], 256
        $region40: #{tpu_custom_call.1} parent=31 // pred_fallthru
          _
        %s262 = sand.u32 %s49, 1
        %s263 = scalar_lea.sflag [#allocation3], %s262
        %s264 = sand.u32 %s49, 1
        %s265 = smul.addr %s264, 8
        %s266 = scalar_lea.vmem [#allocation2], %s265
        %p267 = pneg %p62
        %p268 = pneg %p59
        %p269 = pneg %p83
        %p270 = pneg %p80
        %p271 = pneg %p104
        %p272 = pneg %p101
        %p273 = pneg %p132
        %p274 = pneg %p129
        %s275 = sand.u32 %s119, 1
        %s276 = scalar_lea.sflag [#allocation4], %s275
        %s277 = sand.u32 %s119, 1
        %s278 = smul.addr %s277, 16
        %s279 = scalar_lea.vmem [#allocation7], %s278
        %p280 = pneg %p160
        %p281 = pneg %p157
        %s282 = sand.u32 %s27, 1
        %s283 = scalar_lea.sflag [#allocation9], %s282
        %s284 = sand.u32 %s147, 1
        %s285 = smul.addr %s284, 16
        %s286 = scalar_lea.vmem [#allocation8], %s285
        %p287 = pneg %p188
        %p288 = pneg %p185
        %s289 = sand.u32 %s27, 1
        %s290 = scalar_lea.sflag [#allocation9], %s289
        %s291 = sand.u32 %s175, 1
        %s292 = smul.addr %s291, 16
        %s293 = scalar_lea.vmem [#allocation10], %s292
        %v295 = vld [vmem:[%s253] sm:$0xff]
        %v296 = vpack.c.bf16 %v295, %v295
        %v297 = vld [vmem:[#allocation5] sm:$0xf]
        %v298 = vld [vmem:[#allocation5 + $0x4] sm:$0xf]
        %v299 = vld [vmem:[#allocation5 + $0x8] sm:$0xf]
        %v300 = vld [vmem:[#allocation5 + $0xc] sm:$0xf]
        %v301 = vld [vmem:[%s2] sm:$0x1]
        %v303 = vlaneseq
        %v304 = vshrl.u32 %v303, 7
        %v305 = vsub.s32 0, %v304
        %v306 = vrot.slane %v301, %v305
        %v312 = vunpack.c.l.b16 %v297
        %v313 = vunpack.c.l.b16 %v298
        %v314 = vunpack.c.l.b16 %v299
        %v315 = vunpack.c.l.b16 %v300
        %v316 = vpack.c.b16 %v313, %v312
        %v317 = vpack.c.b16 %v315, %v314
        %vm320 = vcmask 261120
        %v322 = vsel %vm320, %v296, 0
        %324 = vmatprep.subr.bf16.mxu0 0
        %325 = vmatpush1.bf16.msra.mxu0 %v316
        %326 = vmatprep.subr.bf16.mxu0 0
        %327 = vmatpush1.bf16.msra.mxu0 %v317
        %328 = vmatprep.subr.bf16.mxu0 0
        %329 = vmatpush1.bf16.msra.mxu0 0
        %330 = vmatprep.subr.bf16.mxu0 0
        %331 = vmatpush1.bf16.msra.mxu0 0
        %332 = vmatprep.subr.bf16.mxu0 0
        %333 = vmatpush1.bf16.msra.mxu0 0
        %334 = vmatprep.subr.bf16.mxu0 0
        %335 = vmatpush1.bf16.msra.mxu0 0
        %336 = vmatprep.subr.bf16.mxu0 0
        %337 = vmatpush1.bf16.msra.mxu0 0
        %338 = vmatprep.subr.bf16.mxu0 0
        %339 = vmatpush1.bf16.msra.mxu0 0
        %340 = vmatprep.subr.bf16.mxu0 0
        %341 = vmatpush1.bf16.msra.mxu0 0
        %342 = vmatprep.subr.bf16.mxu0 0
        %343 = vmatpush1.bf16.msra.mxu0 0
        %344 = vmatprep.subr.bf16.mxu0 0
        %345 = vmatpush1.bf16.msra.mxu0 0
        %346 = vmatprep.subr.bf16.mxu0 0
        %347 = vmatpush1.bf16.msra.mxu0 0
        %348 = vmatprep.subr.bf16.mxu0 0
        %349 = vmatpush1.bf16.msra.mxu0 0
        %350 = vmatprep.subr.bf16.mxu0 0
        %351 = vmatpush1.bf16.msra.mxu0 0
        %352 = vmatprep.subr.bf16.mxu0 0
        %353 = vmatpush1.bf16.msra.mxu0 0
        %354 = vmatprep.subr.bf16.mxu0 0
        %355 = vmatpush1.bf16.msra.mxu0 0
        %356 = vmatprep.mubr.bf16.mxu0 0
        %357 = vmatmul.mubr.bf16.gmra.mrb[0].mxu0 %v322
        %v358 = vpop.f32.mrb[0].mxu0
        %v359 = vadd.f32 %v306, %v358
        %v360 = vpop.f32.mrb[0].mxu0
        %v361 = vpop.f32.mrb[0].mxu0
        %v362 = vpop.f32.mrb[0].mxu0
        %363 = vdwg.mxu0
        %v364 = vpack.c.bf16 %v359, %v359
        %vm365 = vcmask 60416
        %366 = vst.msk [vmem:[%s279] sm:$0xf] %vm365, %v364
        %v368 = vunpack.c.l.b16 %v364
        %v369 = vpack.c.b16 %v368, %v368
        %370 = vrot.lane.b32.xlu0 %v369, 96
        %v371 = vpop.permute.xlu0 %370
        %373 = vst.msk [vmem:[%s286] sm:$0xf] %vm365, %v371
        %374 = vrot.lane.b32.xlu0 %v369, 64
        %v375 = vpop.permute.xlu0 %374
        %377 = vst.msk [vmem:[%s293] sm:$0xf] %vm365, %v375
        %378 = vrot.lane.b32.xlu0 %v369, 120
        %v379 = vpop.permute.xlu0 %378
        %s381 = scalar_lea.vmem %s279, 4 [#allocation7]
        %382 = vst.msk [vmem:[%s381] sm:$0xf] %vm365, %v379
        %383 = vrot.lane.b32.xlu0 %v369, 88
        %v384 = vpop.permute.xlu0 %383
        %s386 = scalar_lea.vmem %s286, 4 [#allocation8]
        %387 = vst.msk [vmem:[%s386] sm:$0xf] %vm365, %v384
        %388 = vrot.lane.b32.xlu0 %v369, 56
        %v389 = vpop.permute.xlu0 %388
        %s391 = scalar_lea.vmem %s293, 4 [#allocation10]
        %392 = vst.msk [vmem:[%s391] sm:$0xf] %vm365, %v389
        %393 = vrot.lane.b32.xlu0 %v369, 112
        %v394 = vpop.permute.xlu0 %393
        %s396 = scalar_lea.vmem %s279, 8 [#allocation7]
        %397 = vst.msk [vmem:[%s396] sm:$0xf] %vm365, %v394
        %398 = vrot.lane.b32.xlu0 %v369, 80
        %v399 = vpop.permute.xlu0 %398
        %s401 = scalar_lea.vmem %s286, 8 [#allocation8]
        %402 = vst.msk [vmem:[%s401] sm:$0xf] %vm365, %v399
        %403 = vrot.lane.b32.xlu0 %v369, 48
        %v404 = vpop.permute.xlu0 %403
        %s406 = scalar_lea.vmem %s293, 8 [#allocation10]
        %407 = vst.msk [vmem:[%s406] sm:$0xf] %vm365, %v404
        %408 = vrot.lane.b32.xlu0 %v369, 104
        %v409 = vpop.permute.xlu0 %408
        %s411 = scalar_lea.vmem %s279, 12 [#allocation7]
        %412 = vst.msk [vmem:[%s411] sm:$0xf] %vm365, %v409
        %413 = vrot.lane.b32.xlu0 %v369, 72
        %v414 = vpop.permute.xlu0 %413
        %s416 = scalar_lea.vmem %s286, 12 [#allocation8]
        %417 = vst.msk [vmem:[%s416] sm:$0xf] %vm365, %v414
        %418 = vrot.lane.b32.xlu0 %v369, 40
        %v419 = vpop.permute.xlu0 %418
        %s421 = scalar_lea.vmem %s293, 12 [#allocation10]
        %422 = vst.msk [vmem:[%s421] sm:$0xf] %vm365, %v419
        %s423 = sand.u32 %s119, 1
        %s424 = scalar_lea.sflag [#allocation4], %s423
        %s425 = sand.u32 %s119, 1
        %s426 = smul.addr %s425, 16
        %s427 = scalar_lea.vmem [#allocation7], %s426
        %s428 = sand.u32 %s27, 1
        %s429 = scalar_lea.sflag [#allocation9], %s428
        %s430 = sand.u32 %s147, 1
        %s431 = smul.addr %s430, 16
        %s432 = scalar_lea.vmem [#allocation8], %s431
        %s433 = sand.u32 %s27, 1
        %s434 = scalar_lea.sflag [#allocation9], %s433
        %s435 = sand.u32 %s175, 1
        %s436 = smul.addr %s435, 16
        %s437 = scalar_lea.vmem [#allocation10], %s436
        // Predicated region
        $region41: #{tpu_custom_call.1} parent=31 // pred_check
          %p438 = pneg %p129
        $region42: #{tpu_custom_call.1} parent=31 // pred_check_branch
          %440 = sbr.rel (%p438) target = $region44
        $region43: #{tpu_custom_call.1} parent=31 // pred_region
          %s442 = ssub.s32 256, 256
          %443 = vsyncadd %s424, %s442
          %s444 = smul.addr %s31, 4
          %s445 = sadd.s32 %s32, %s444
          %s446 = smul.addr %s445, 64
          %s447 = scalar_lea.hbm %s3, %s446
          %s448 = sshll.u32 %s427, 4
          %s449 = int_to_ptr.vmem [resolvable:$true] %s448
          %454 = dma.vmem_to_hbm [thread:$0]  %s449, 256, %s447, %s424, 64, 64, 4
        $region44: #{tpu_custom_call.1} parent=31 // pred_fallthru
          _
        // Predicated region
        $region45: #{tpu_custom_call.1} parent=31 // pred_check
          %p455 = pneg %p157
        $region46: #{tpu_custom_call.1} parent=31 // pred_check_branch
          %457 = sbr.rel (%p455) target = $region48
        $region47: #{tpu_custom_call.1} parent=31 // pred_region
          %s459 = ssub.s32 256, 256
          %460 = vsyncadd %s429, %s459
          %s461 = smul.addr %s31, 4
          %s462 = sadd.s32 %s32, %s461
          %s463 = smul.addr %s462, 64
          %s464 = scalar_lea.hbm %s4, %s463
          %s465 = sshll.u32 %s432, 4
          %s466 = int_to_ptr.vmem [resolvable:$true] %s465
          %471 = dma.vmem_to_hbm [thread:$0]  %s466, 256, %s464, %s429, 64, 64, 4
        $region48: #{tpu_custom_call.1} parent=31 // pred_fallthru
          _
        // Predicated region
        $region49: #{tpu_custom_call.1} parent=31 // pred_check
          %p472 = pneg %p185
        $region50: #{tpu_custom_call.1} parent=31 // pred_check_branch
          %474 = sbr.rel (%p472) target = $region52
        $region51: #{tpu_custom_call.1} parent=31 // pred_region
          %s476 = ssub.s32 256, 256
          %477 = vsyncadd %s434, %s476
          %s478 = smul.addr %s31, 4
          %s479 = sadd.s32 %s32, %s478
          %s480 = smul.addr %s479, 64
          %s481 = scalar_lea.hbm %s5, %s480
          %s482 = sshll.u32 %s437, 4
          %s483 = int_to_ptr.vmem [resolvable:$true] %s482
          %488 = dma.vmem_to_hbm [thread:$0]  %s483, 256, %s481, %s434, 64, 64, 4
        $region52: #{tpu_custom_call.1} parent=31 // pred_fallthru
          _
      $region32: #{tpu_custom_call.1} parent=5 // pred_fallthru
        _
      %p489 = scmp.le.s32.totalorder 2, %s22
      // Predicated region
      $region53: #{tpu_custom_call.1} parent=5 // pred_check
        %p490 = pneg %p489
      $region54: #{tpu_custom_call.1} parent=5 // pred_check_branch
        %492 = sbr.rel (%p490) target = $region56
      $region55: #{tpu_custom_call.1} parent=5 // pred_region
        %s493 = ssub.s32 %s22, 2
        // Predicated region
        $region57: #{tpu_custom_call.1} parent=55 // pred_check
          %p494 = pneg %p135
        $region58: #{tpu_custom_call.1} parent=55 // pred_check_branch
          %496 = sbr.rel (%p494) target = $region60
        $region59: #{tpu_custom_call.1} parent=55 // pred_region
          %s497 = sand.u32 %s120, 1
          %s498 = scalar_lea.sflag [#allocation4], %s497
          %s499 = sand.u32 %s120, 1
          %s500 = smul.addr %s499, 16
          %s501 = scalar_lea.vmem [#allocation7], %s500
          %502 = dma.done %s498, 256
        $region60: #{tpu_custom_call.1} parent=55 // pred_fallthru
          _
        // Predicated region
        $region61: #{tpu_custom_call.1} parent=55 // pred_check
          %p503 = pneg %p163
        $region62: #{tpu_custom_call.1} parent=55 // pred_check_branch
          %505 = sbr.rel (%p503) target = $region64
        $region63: #{tpu_custom_call.1} parent=55 // pred_region
          %s506 = sand.u32 %s28, 1
          %s507 = scalar_lea.sflag [#allocation9], %s506
          %s508 = sand.u32 %s148, 1
          %s509 = smul.addr %s508, 16
          %s510 = scalar_lea.vmem [#allocation8], %s509
          %511 = dma.done %s507, 256
        $region64: #{tpu_custom_call.1} parent=55 // pred_fallthru
          _
        // Predicated region
        $region65: #{tpu_custom_call.1} parent=55 // pred_check
          %p512 = pneg %p191
        $region66: #{tpu_custom_call.1} parent=55 // pred_check_branch
          %514 = sbr.rel (%p512) target = $region68
        $region67: #{tpu_custom_call.1} parent=55 // pred_region
          %s515 = sand.u32 %s28, 1
          %s516 = scalar_lea.sflag [#allocation9], %s515
          %s517 = sand.u32 %s176, 1
          %s518 = smul.addr %s517, 16
          %s519 = scalar_lea.vmem [#allocation10], %s518
          %520 = dma.done %s516, 256
        $region68: #{tpu_custom_call.1} parent=55 // pred_fallthru
          _
      $region56: #{tpu_custom_call.1} parent=5 // pred_fallthru
        _
    $region6: #{tpu_custom_call.1} parent=1 // loop_footer
      %s26 = sadd.s32 1, %s22
    $region7: #{tpu_custom_call.1} parent=1 // loop_footer_branch
      %21 = sbr.rel target = $region3
    $region8: #{tpu_custom_call.1} parent=1 // loop_exit
      _
    %521 = vsyncpa [#allocation3], 1
    %s522 = scalar_lea.sflag [#allocation3], 1
    %523 = vsyncpa %s522, 1
    %524 = vsyncpa [#allocation6], 1
    %525 = vsyncpa [#allocation4], 1
    %s526 = scalar_lea.sflag [#allocation4], 1
    %527 = vsyncpa %s526, 1
    %528 = vsyncpa [#allocation9], 1
    %s529 = scalar_lea.sflag [#allocation9], 1
    %530 = vsyncpa %s529, 1

</llo_original>
